<compile_context>
chip_gen: v5e
topology: v5e:2x2
jax: 0.10.0
libtpu: 0.0.40
codegen_flags: <defaults>
</compile_context>

<pallas_src>
import functools

import jax
import jax.numpy as jnp
import numpy as np
from jax import lax
from jax.experimental import pallas as pl
from jax.experimental.pallas import tpu as pltpu


def _stats_kernel(x_ref, w_ref, inv_ref, sum_ref, sq_ref, vmax_ref, vmin_ref,
                  *, n_pillars: int):
    """Phase 1: per-channel sum/sumsq and per-pillar max/min of v = W^T x."""
    @pl.when(pl.program_id(0) == 0)
    def _():
        sum_ref[...] = jnp.zeros(sum_ref.shape, jnp.float32)
        sq_ref[...] = jnp.zeros(sq_ref.shape, jnp.float32)
        vmax_ref[...] = jnp.full(vmax_ref.shape, -jnp.inf, jnp.float32)
        vmin_ref[...] = jnp.full(vmin_ref.shape, jnp.inf, jnp.float32)

    # v = W^T x -> (Cout, block_n), points lane-dense.  Padded point columns are
    # all-zero (bias dropped) so they contribute nothing to the sums; the
    # wrapper divides by the true global N (not the per-block or padded count).
    v = jnp.dot(w_ref[...], x_ref[...], preferred_element_type=jnp.float32)

    sum_ref[...] += jnp.sum(v, axis=1, keepdims=True)
    sq_ref[...] += jnp.sum(v * v, axis=1, keepdims=True)
    # TODO(synk): Welford-style accumulation if activations ever have a large
    # mean relative to spread (E[x^2]-E[x]^2 cancellation in f32).

    # Per-pillar partial max/min of raw v (BN affine + ReLU applied later in the
    # wrapper via monotonicity) — phase 1 never needs global batch statistics.
    # Partials are built as one (Cout, P) tile and merged with a single batched
    # store per block (no per-pillar single-row/column stores).
    inv = inv_ref[...]                                             # (1, block_n)
    cout = v.shape[0]
    col = lax.broadcasted_iota(jnp.int32, (cout, n_pillars), 1)    # pillar col id
    pmax = jnp.full((cout, n_pillars), -jnp.inf, jnp.float32)
    pmin = jnp.full((cout, n_pillars), jnp.inf, jnp.float32)
    for p in range(n_pillars):                  # small static unroll (toy P)
        m = inv == p                                               # (1, block_n)
        cmax = jnp.max(jnp.where(m, v, -jnp.inf), axis=1, keepdims=True)
        cmin = jnp.min(jnp.where(m, v, jnp.inf), axis=1, keepdims=True)
        pmax = jnp.where(col == p, cmax, pmax)
        pmin = jnp.where(col == p, cmin, pmin)
    vmax_ref[...] = jnp.maximum(vmax_ref[...], pmax)
    vmin_ref[...] = jnp.minimum(vmin_ref[...], pmin)


def _apply_kernel(x_ref, w_ref, inv_ref, scale_ref, shift_ref, xmax_ref, o_ref,
                  *, n_pillars: int):
    """Phase 2: h = relu(v*scale + shift); out = (h + x_max[unq_inv]) / 2."""
    v = jnp.dot(w_ref[...], x_ref[...], preferred_element_type=jnp.float32)
    h = jnp.maximum(v * scale_ref[...] + shift_ref[...], 0.0)      # (Cout, bn)

    inv = inv_ref[...]                                             # (1, bn)
    bn = inv.shape[1]
    iota_p = lax.broadcasted_iota(jnp.int32, (n_pillars, bn), 0)
    onehot = (inv == iota_p).astype(jnp.float32)                   # (P, bn)
    # Gather x_max[:, unq_inv] via a tiny one-hot matmul on the otherwise-idle
    # MXU (fine for small pillar counts; padded points have an all-zero column).
    gathered = jnp.dot(xmax_ref[...], onehot,
                       preferred_element_type=jnp.float32)         # (Cout, bn)

    # Lane-dense (Cout, block_n) store: full 128-lane vregs, unmasked vst.
    o_ref[...] = (h + gathered) * 0.5


def pillar_pfn_layer(inputs, weight, bias, gamma, beta, unq_inv, *,
                     num_pillars: int, eps: float = 1e-3, block_n: int = 512):
    """inputs: (N, Cin) f32; weight: (Cin, Cout) (= PyTorch Linear weight.T);
    unq_inv: (N,) int32 in [0, num_pillars).  Returns (N, Cout) f32."""
    del bias  # cancels exactly under training-mode BatchNorm centering
    n, cin = inputs.shape
    cout = weight.shape[1]

    # Lane-dense point axis: pad N to a multiple of block_n (multiple of 128).
    # block_n <= 8192 keeps the double-buffered working set well inside the
    # v7x 64 MiB VMEM at Cout=32 f32.
    block_n = max(128, (min(block_n, 8192) // 128) * 128)
    n_pad = int(pl.cdiv(n, block_n)) * block_n
    nb = n_pad // block_n
    pad = n_pad - n

    # Transposed working layout: channels on sublanes, points on lanes.
    x_t = jnp.asarray(inputs, jnp.float32).T                       # (Cin, N)
    w_t = jnp.asarray(weight, jnp.float32).T                       # (Cout, Cin)
    inv_row = unq_inv.reshape(1, n).astype(jnp.int32)              # (1, N)
    if pad:
        x_t = jnp.pad(x_t, ((0, 0), (0, pad)))                     # zero points
        inv_row = jnp.pad(inv_row, ((0, 0), (0, pad)), constant_values=-1)

    # Raise the scoped VMEM limit only when big tiles are requested
    # (v6e/v7x scoped default ~32 MiB; v5e 16 MiB).
    vmem_limit = 64 * 1024 * 1024 if block_n > 4096 else None

    # ---- Phase 1: global BN sums + per-pillar v-max / v-min ------------------
    vsum, vsq, vmax, vmin = pl.pallas_call(
        functools.partial(_stats_kernel, n_pillars=num_pillars),
        grid=(nb,),
        out_shape=(
            jax.ShapeDtypeStruct((cout, 1), jnp.float32),
            jax.ShapeDtypeStruct((cout, 1), jnp.float32),
            jax.ShapeDtypeStruct((cout, num_pillars), jnp.float32),
            jax.ShapeDtypeStruct((cout, num_pillars), jnp.float32),
        ),
        in_specs=[
            pl.BlockSpec((cin, block_n), lambda i: (0, i)),
            pl.BlockSpec((cout, cin), lambda i: (0, 0)),
            pl.BlockSpec((1, block_n), lambda i: (0, i)),
        ],
        out_specs=(
            pl.BlockSpec((cout, 1), lambda i: (0, 0)),
            pl.BlockSpec((cout, 1), lambda i: (0, 0)),
            pl.BlockSpec((cout, num_pillars), lambda i: (0, 0)),
            pl.BlockSpec((cout, num_pillars), lambda i: (0, 0)),
        ),
        compiler_params=pltpu.CompilerParams(
            dimension_semantics=("arbitrary",), vmem_limit_bytes=vmem_limit),
    )(x_t, w_t, inv_row)

    # ---- Finalize (tiny, plain JAX): fold BN into one per-channel affine -----
    inv_count = 1.0 / float(n)                    # true global N, not per-block
    mean = vsum[:, 0] * inv_count
    var = vsq[:, 0] * inv_count - mean * mean     # biased batch variance
    scale = gamma * lax.rsqrt(var + eps)          # (Cout,)
    shift = beta - mean * scale                   # (Cout,)
    # max over a pillar of relu(scale*v + shift) == relu(scale*v_ext + shift)
    # with v_ext = v_max if scale >= 0 else v_min (affine & ReLU are monotone).
    vext = jnp.where(scale[:, None] >= 0.0, vmax, vmin)            # (Cout, P)
    xmax_h = jnp.maximum(vext * scale[:, None] + shift[:, None], 0.0)
    xmax_h = jnp.where(jnp.isfinite(vext), xmax_h, 0.0)            # empty pillars

    # ---- Phase 2: affine + ReLU + gather, fully parallel over N blocks -------
    out_t = pl.pallas_call(
        functools.partial(_apply_kernel, n_pillars=num_pillars),
        grid=(nb,),
        out_shape=jax.ShapeDtypeStruct((cout, n_pad), jnp.float32),
        in_specs=[
            pl.BlockSpec((cin, block_n), lambda i: (0, i)),
            pl.BlockSpec((cout, cin), lambda i: (0, 0)),
            pl.BlockSpec((1, block_n), lambda i: (0, i)),
            pl.BlockSpec((cout, 1), lambda i: (0, 0)),
            pl.BlockSpec((cout, 1), lambda i: (0, 0)),
            pl.BlockSpec((cout, num_pillars), lambda i: (0, 0)),
        ],
        out_specs=pl.BlockSpec((cout, block_n), lambda i: (0, i)),
        compiler_params=pltpu.CompilerParams(
            dimension_semantics=("parallel",), vmem_limit_bytes=vmem_limit),
    )(x_t, w_t, inv_row, scale.reshape(cout, 1), shift.reshape(cout, 1), xmax_h)

    return out_t[:, :n].T                         # (N, Cout)


def reference(inputs, weight, bias, gamma, beta, unq_inv, *, num_pillars, eps=1e-3):
    v = inputs @ weight + bias
    mean = v.mean(axis=0)
    var = ((v - mean) ** 2).mean(axis=0)
    h = jnp.maximum(gamma * (v - mean) / jnp.sqrt(var + eps) + beta, 0.0)
    x_max = jax.ops.segment_max(h, unq_inv, num_segments=num_pillars)
    return (h + x_max[unq_inv]) * 0.5


if __name__ == "__main__":
    # Module config: PillarPFNLayer(in_channel=10, out_channel=64,
    #                               use_norm=True, last_layer=False)
    # -> effective linear: 10 -> 32 (out_channel // 2)
    N, Cin, Cout, P = 1024, 10, 32, 8

    key = jax.random.PRNGKey(0)
    kx, kw, kb, kg, kbeta, kperm = jax.random.split(key, 6)

    x = jax.random.normal(kx, (N, Cin), dtype=jnp.float32)
    w = 0.1 * jax.random.normal(kw, (Cin, Cout), dtype=jnp.float32)
    b = 0.1 * jax.random.normal(kb, (Cout,), dtype=jnp.float32)
    gamma = 1.0 + 0.1 * jax.random.normal(kg, (Cout,), dtype=jnp.float32)
    gamma = gamma.at[0].set(-0.75)   # exercise the negative-scale (v_min) path
    beta = 0.1 * jax.random.normal(kbeta, (Cout,), dtype=jnp.float32)
    # every pillar gets at least one point (mirrors torch.unique inverse indices)
    unq_inv = jax.random.permutation(kperm, jnp.arange(N, dtype=jnp.int32) % P)

    out = pillar_pfn_layer(x, w, b, gamma, beta, unq_inv,
                           num_pillars=P, block_n=256)
    out = jax.block_until_ready(out)

    ref = reference(x, w, b, gamma, beta, unq_inv, num_pillars=P)
    np.testing.assert_allclose(np.asarray(out), np.asarray(ref),
                               rtol=5e-3, atol=5e-3)
    print("KERNEL_OK")
</pallas_src>

<mosaic_0001>
module attributes {stable_mosaic.version = 11 : i64} {
  func.func @_stats_kernel(%arg0: i32, %arg1: memref<10x256xf32, #tpu.memory_space<vmem>>, %arg2: memref<32x10xf32, #tpu.memory_space<vmem>>, %arg3: memref<1x256xi32, #tpu.memory_space<vmem>>, %arg4: memref<32x1xf32, #tpu.memory_space<vmem>>, %arg5: memref<32x1xf32, #tpu.memory_space<vmem>>, %arg6: memref<32x8xf32, #tpu.memory_space<vmem>>, %arg7: memref<32x8xf32, #tpu.memory_space<vmem>>) attributes {dimension_semantics = [#tpu.dimension_semantics<arbitrary>], iteration_bounds = array<i64: 4>, scalar_prefetch = 0 : i64, scratch_operands = 0 : i64, tpu.core_type = #tpu.core_type<tc>, window_params = [{transform_indices = @transform_0, window_bounds = array<i64: 10, 256>}, {pipeline_mode = #tpu.pipeline_mode<synchronous>, transform_indices = @transform_1, window_bounds = array<i64: 32, 10>}, {transform_indices = @transform_2, window_bounds = array<i64: 1, 256>}, {pipeline_mode = #tpu.pipeline_mode<synchronous>, transform_indices = @transform_3, window_bounds = array<i64: 32, 1>}, {pipeline_mode = #tpu.pipeline_mode<synchronous>, transform_indices = @transform_4, window_bounds = array<i64: 32, 1>}, {pipeline_mode = #tpu.pipeline_mode<synchronous>, transform_indices = @transform_5, window_bounds = array<i64: 32, 8>}, {pipeline_mode = #tpu.pipeline_mode<synchronous>, transform_indices = @transform_6, window_bounds = array<i64: 32, 8>}]} {
    %c0_i32 = arith.constant 0 : i32
    %0 = arith.cmpi eq, %arg0, %c0_i32 : i32
    %1 = arith.extui %0 : i1 to i32
    %c0_i32_0 = arith.constant 0 : i32
    %2 = arith.cmpi ne, %1, %c0_i32_0 : i32
    scf.if %2 {
      %cst_75 = arith.constant 0.000000e+00 : f32
      %219 = vector.broadcast %cst_75 : f32 to vector<32x1xf32>
      %c0_76 = arith.constant 0 : index
      %c0_77 = arith.constant 0 : index
      %220 = vector.load %arg4[%c0_76, %c0_77] : memref<32x1xf32, #tpu.memory_space<vmem>>, vector<32x1xf32>
      tpu.vector_store %arg4[%c0_76, %c0_77], %219 {strides = array<i32>} : memref<32x1xf32, #tpu.memory_space<vmem>>, vector<32x1xf32>,
      %cst_78 = arith.constant 0.000000e+00 : f32
      %221 = vector.broadcast %cst_78 : f32 to vector<32x1xf32>
      %c0_79 = arith.constant 0 : index
      %c0_80 = arith.constant 0 : index
      %222 = vector.load %arg5[%c0_79, %c0_80] : memref<32x1xf32, #tpu.memory_space<vmem>>, vector<32x1xf32>
      tpu.vector_store %arg5[%c0_79, %c0_80], %221 {strides = array<i32>} : memref<32x1xf32, #tpu.memory_space<vmem>>, vector<32x1xf32>,
      %cst_81 = arith.constant 0xFF800000 : f32
      %223 = vector.broadcast %cst_81 : f32 to vector<32x8xf32>
      %c0_82 = arith.constant 0 : index
      %c0_83 = arith.constant 0 : index
      %224 = vector.load %arg6[%c0_82, %c0_83] : memref<32x8xf32, #tpu.memory_space<vmem>>, vector<32x8xf32>
      tpu.vector_store %arg6[%c0_82, %c0_83], %223 {strides = array<i32>} : memref<32x8xf32, #tpu.memory_space<vmem>>, vector<32x8xf32>,
      %cst_84 = arith.constant 0x7F800000 : f32
      %225 = vector.broadcast %cst_84 : f32 to vector<32x8xf32>
      %c0_85 = arith.constant 0 : index
      %c0_86 = arith.constant 0 : index
      %226 = vector.load %arg7[%c0_85, %c0_86] : memref<32x8xf32, #tpu.memory_space<vmem>>, vector<32x8xf32>
      tpu.vector_store %arg7[%c0_85, %c0_86], %225 {strides = array<i32>} : memref<32x8xf32, #tpu.memory_space<vmem>>, vector<32x8xf32>,
    } else {
    }
    %c0 = arith.constant 0 : index
    %c0_1 = arith.constant 0 : index
    %3 = vector.load %arg2[%c0, %c0_1] : memref<32x10xf32, #tpu.memory_space<vmem>>, vector<32x10xf32>
    %c0_2 = arith.constant 0 : index
    %c0_3 = arith.constant 0 : index
    %4 = vector.load %arg1[%c0_2, %c0_3] : memref<10x256xf32, #tpu.memory_space<vmem>>, vector<10x256xf32>
    %cst = arith.constant dense<0.000000e+00> : vector<32x256xf32>
    %5 = tpu.matmul %3, %4, %cst {dimension_numbers = #tpu.dot_dimension_numbers<[1], [0], [0], [1], [0, 0, 1, 1], [], []>} : vector<32x10xf32>, vector<10x256xf32>, vector<32x256xf32> -> vector<32x256xf32>
    %c0_4 = arith.constant 0 : index
    %c0_5 = arith.constant 0 : index
    %6 = vector.load %arg4[%c0_4, %c0_5] : memref<32x1xf32, #tpu.memory_space<vmem>>, vector<32x1xf32>
    %cst_6 = arith.constant dense<0.000000e+00> : vector<32xf32>
    %7 = vector.multi_reduction <add>, %5, %cst_6 [1] : vector<32x256xf32> to vector<32xf32>
    %8 = vector.shape_cast %7 : vector<32xf32> to vector<32x1xf32>
    %9 = arith.addf %6, %8 : vector<32x1xf32>
    %c0_7 = arith.constant 0 : index
    %c0_8 = arith.constant 0 : index
    %10 = vector.load %arg4[%c0_7, %c0_8] : memref<32x1xf32, #tpu.memory_space<vmem>>, vector<32x1xf32>
    tpu.vector_store %arg4[%c0_7, %c0_8], %9 {strides = array<i32>} : memref<32x1xf32, #tpu.memory_space<vmem>>, vector<32x1xf32>,
    %c0_9 = arith.constant 0 : index
    %c0_10 = arith.constant 0 : index
    %11 = vector.load %arg5[%c0_9, %c0_10] : memref<32x1xf32, #tpu.memory_space<vmem>>, vector<32x1xf32>
    %12 = arith.mulf %5, %5 : vector<32x256xf32>
    %cst_11 = arith.constant dense<0.000000e+00> : vector<32xf32>
    %13 = vector.multi_reduction <add>, %12, %cst_11 [1] : vector<32x256xf32> to vector<32xf32>
    %14 = vector.shape_cast %13 : vector<32xf32> to vector<32x1xf32>
    %15 = arith.addf %11, %14 : vector<32x1xf32>
    %c0_12 = arith.constant 0 : index
    %c0_13 = arith.constant 0 : index
    %16 = vector.load %arg5[%c0_12, %c0_13] : memref<32x1xf32, #tpu.memory_space<vmem>>, vector<32x1xf32>
    tpu.vector_store %arg5[%c0_12, %c0_13], %15 {strides = array<i32>} : memref<32x1xf32, #tpu.memory_space<vmem>>, vector<32x1xf32>,
    %c0_14 = arith.constant 0 : index
    %c0_15 = arith.constant 0 : index
    %17 = vector.load %arg3[%c0_14, %c0_15] : memref<1x256xi32, #tpu.memory_space<vmem>>, vector<1x256xi32>
    %18 = tpu.iota {dimensions = array<i32: 1>} : vector<32x8xi32>
    %cst_16 = arith.constant 0xFF800000 : f32
    %19 = vector.broadcast %cst_16 : f32 to vector<32x8xf32>
    %cst_17 = arith.constant 0x7F800000 : f32
    %20 = vector.broadcast %cst_17 : f32 to vector<32x8xf32>
    %c0_i32_18 = arith.constant 0 : i32
    %21 = vector.broadcast %c0_i32_18 : i32 to vector<1x256xi32>
    %22 = arith.cmpi eq, %17, %21 : vector<1x256xi32>
    %cst_19 = arith.constant 0xFF800000 : f32
    %23 = vector.shape_cast %22 : vector<1x256xi1> to vector<1x256xi1>
    %24 = vector.broadcast %23 : vector<1x256xi1> to vector<32x256xi1>
    %25 = vector.broadcast %cst_19 : f32 to vector<32x256xf32>
    %26 = arith.select %24, %5, %25 : vector<32x256xi1>, vector<32x256xf32>
    %cst_20 = arith.constant dense<0xFF800000> : vector<32xf32>
    %27 = vector.multi_reduction <maximumf>, %26, %cst_20 [1] : vector<32x256xf32> to vector<32xf32>
    %28 = vector.shape_cast %27 : vector<32xf32> to vector<32x1xf32>
    %cst_21 = arith.constant 0x7F800000 : f32
    %29 = vector.shape_cast %22 : vector<1x256xi1> to vector<1x256xi1>
    %30 = vector.broadcast %29 : vector<1x256xi1> to vector<32x256xi1>
    %31 = vector.broadcast %cst_21 : f32 to vector<32x256xf32>
    %32 = arith.select %30, %5, %31 : vector<32x256xi1>, vector<32x256xf32>
    %cst_22 = arith.constant dense<0x7F800000> : vector<32xf32>
    %33 = vector.multi_reduction <minimumf>, %32, %cst_22 [1] : vector<32x256xf32> to vector<32xf32>
    %34 = vector.shape_cast %33 : vector<32xf32> to vector<32x1xf32>
    %c0_i32_23 = arith.constant 0 : i32
    %35 = vector.broadcast %c0_i32_23 : i32 to vector<32x8xi32>
    %36 = arith.cmpi eq, %18, %35 : vector<32x8xi32>
    %37 = vector.shape_cast %28 : vector<32x1xf32> to vector<32x1xf32>
    %38 = vector.broadcast %37 : vector<32x1xf32> to vector<32x8xf32>
    %39 = arith.select %36, %38, %19 : vector<32x8xi1>, vector<32x8xf32>
    %c0_i32_24 = arith.constant 0 : i32
    %40 = vector.broadcast %c0_i32_24 : i32 to vector<32x8xi32>
    %41 = arith.cmpi eq, %18, %40 : vector<32x8xi32>
    %42 = vector.shape_cast %34 : vector<32x1xf32> to vector<32x1xf32>
    %43 = vector.broadcast %42 : vector<32x1xf32> to vector<32x8xf32>
    %44 = arith.select %41, %43, %20 : vector<32x8xi1>, vector<32x8xf32>
    %c1_i32 = arith.constant 1 : i32
    %45 = vector.broadcast %c1_i32 : i32 to vector<1x256xi32>
    %46 = arith.cmpi eq, %17, %45 : vector<1x256xi32>
    %cst_25 = arith.constant 0xFF800000 : f32
    %47 = vector.shape_cast %46 : vector<1x256xi1> to vector<1x256xi1>
    %48 = vector.broadcast %47 : vector<1x256xi1> to vector<32x256xi1>
    %49 = vector.broadcast %cst_25 : f32 to vector<32x256xf32>
    %50 = arith.select %48, %5, %49 : vector<32x256xi1>, vector<32x256xf32>
    %cst_26 = arith.constant dense<0xFF800000> : vector<32xf32>
    %51 = vector.multi_reduction <maximumf>, %50, %cst_26 [1] : vector<32x256xf32> to vector<32xf32>
    %52 = vector.shape_cast %51 : vector<32xf32> to vector<32x1xf32>
    %cst_27 = arith.constant 0x7F800000 : f32
    %53 = vector.shape_cast %46 : vector<1x256xi1> to vector<1x256xi1>
    %54 = vector.broadcast %53 : vector<1x256xi1> to vector<32x256xi1>
    %55 = vector.broadcast %cst_27 : f32 to vector<32x256xf32>
    %56 = arith.select %54, %5, %55 : vector<32x256xi1>, vector<32x256xf32>
    %cst_28 = arith.constant dense<0x7F800000> : vector<32xf32>
    %57 = vector.multi_reduction <minimumf>, %56, %cst_28 [1] : vector<32x256xf32> to vector<32xf32>
    %58 = vector.shape_cast %57 : vector<32xf32> to vector<32x1xf32>
    %c1_i32_29 = arith.constant 1 : i32
    %59 = vector.broadcast %c1_i32_29 : i32 to vector<32x8xi32>
    %60 = arith.cmpi eq, %18, %59 : vector<32x8xi32>
    %61 = vector.shape_cast %52 : vector<32x1xf32> to vector<32x1xf32>
    %62 = vector.broadcast %61 : vector<32x1xf32> to vector<32x8xf32>
    %63 = arith.select %60, %62, %39 : vector<32x8xi1>, vector<32x8xf32>
    %c1_i32_30 = arith.constant 1 : i32
    %64 = vector.broadcast %c1_i32_30 : i32 to vector<32x8xi32>
    %65 = arith.cmpi eq, %18, %64 : vector<32x8xi32>
    %66 = vector.shape_cast %58 : vector<32x1xf32> to vector<32x1xf32>
    %67 = vector.broadcast %66 : vector<32x1xf32> to vector<32x8xf32>
    %68 = arith.select %65, %67, %44 : vector<32x8xi1>, vector<32x8xf32>
    %c2_i32 = arith.constant 2 : i32
    %69 = vector.broadcast %c2_i32 : i32 to vector<1x256xi32>
    %70 = arith.cmpi eq, %17, %69 : vector<1x256xi32>
    %cst_31 = arith.constant 0xFF800000 : f32
    %71 = vector.shape_cast %70 : vector<1x256xi1> to vector<1x256xi1>
    %72 = vector.broadcast %71 : vector<1x256xi1> to vector<32x256xi1>
    %73 = vector.broadcast %cst_31 : f32 to vector<32x256xf32>
    %74 = arith.select %72, %5, %73 : vector<32x256xi1>, vector<32x256xf32>
    %cst_32 = arith.constant dense<0xFF800000> : vector<32xf32>
    %75 = vector.multi_reduction <maximumf>, %74, %cst_32 [1] : vector<32x256xf32> to vector<32xf32>
    %76 = vector.shape_cast %75 : vector<32xf32> to vector<32x1xf32>
    %cst_33 = arith.constant 0x7F800000 : f32
    %77 = vector.shape_cast %70 : vector<1x256xi1> to vector<1x256xi1>
    %78 = vector.broadcast %77 : vector<1x256xi1> to vector<32x256xi1>
    %79 = vector.broadcast %cst_33 : f32 to vector<32x256xf32>
    %80 = arith.select %78, %5, %79 : vector<32x256xi1>, vector<32x256xf32>
    %cst_34 = arith.constant dense<0x7F800000> : vector<32xf32>
    %81 = vector.multi_reduction <minimumf>, %80, %cst_34 [1] : vector<32x256xf32> to vector<32xf32>
    %82 = vector.shape_cast %81 : vector<32xf32> to vector<32x1xf32>
    %c2_i32_35 = arith.constant 2 : i32
    %83 = vector.broadcast %c2_i32_35 : i32 to vector<32x8xi32>
    %84 = arith.cmpi eq, %18, %83 : vector<32x8xi32>
    %85 = vector.shape_cast %76 : vector<32x1xf32> to vector<32x1xf32>
    %86 = vector.broadcast %85 : vector<32x1xf32> to vector<32x8xf32>
    %87 = arith.select %84, %86, %63 : vector<32x8xi1>, vector<32x8xf32>
    %c2_i32_36 = arith.constant 2 : i32
    %88 = vector.broadcast %c2_i32_36 : i32 to vector<32x8xi32>
    %89 = arith.cmpi eq, %18, %88 : vector<32x8xi32>
    %90 = vector.shape_cast %82 : vector<32x1xf32> to vector<32x1xf32>
    %91 = vector.broadcast %90 : vector<32x1xf32> to vector<32x8xf32>
    %92 = arith.select %89, %91, %68 : vector<32x8xi1>, vector<32x8xf32>
    %c3_i32 = arith.constant 3 : i32
    %93 = vector.broadcast %c3_i32 : i32 to vector<1x256xi32>
    %94 = arith.cmpi eq, %17, %93 : vector<1x256xi32>
    %cst_37 = arith.constant 0xFF800000 : f32
    %95 = vector.shape_cast %94 : vector<1x256xi1> to vector<1x256xi1>
    %96 = vector.broadcast %95 : vector<1x256xi1> to vector<32x256xi1>
    %97 = vector.broadcast %cst_37 : f32 to vector<32x256xf32>
    %98 = arith.select %96, %5, %97 : vector<32x256xi1>, vector<32x256xf32>
    %cst_38 = arith.constant dense<0xFF800000> : vector<32xf32>
    %99 = vector.multi_reduction <maximumf>, %98, %cst_38 [1] : vector<32x256xf32> to vector<32xf32>
    %100 = vector.shape_cast %99 : vector<32xf32> to vector<32x1xf32>
    %cst_39 = arith.constant 0x7F800000 : f32
    %101 = vector.shape_cast %94 : vector<1x256xi1> to vector<1x256xi1>
    %102 = vector.broadcast %101 : vector<1x256xi1> to vector<32x256xi1>
    %103 = vector.broadcast %cst_39 : f32 to vector<32x256xf32>
    %104 = arith.select %102, %5, %103 : vector<32x256xi1>, vector<32x256xf32>
    %cst_40 = arith.constant dense<0x7F800000> : vector<32xf32>
    %105 = vector.multi_reduction <minimumf>, %104, %cst_40 [1] : vector<32x256xf32> to vector<32xf32>
    %106 = vector.shape_cast %105 : vector<32xf32> to vector<32x1xf32>
    %c3_i32_41 = arith.constant 3 : i32
    %107 = vector.broadcast %c3_i32_41 : i32 to vector<32x8xi32>
    %108 = arith.cmpi eq, %18, %107 : vector<32x8xi32>
    %109 = vector.shape_cast %100 : vector<32x1xf32> to vector<32x1xf32>
    %110 = vector.broadcast %109 : vector<32x1xf32> to vector<32x8xf32>
    %111 = arith.select %108, %110, %87 : vector<32x8xi1>, vector<32x8xf32>
    %c3_i32_42 = arith.constant 3 : i32
    %112 = vector.broadcast %c3_i32_42 : i32 to vector<32x8xi32>
    %113 = arith.cmpi eq, %18, %112 : vector<32x8xi32>
    %114 = vector.shape_cast %106 : vector<32x1xf32> to vector<32x1xf32>
    %115 = vector.broadcast %114 : vector<32x1xf32> to vector<32x8xf32>
    %116 = arith.select %113, %115, %92 : vector<32x8xi1>, vector<32x8xf32>
    %c4_i32 = arith.constant 4 : i32
    %117 = vector.broadcast %c4_i32 : i32 to vector<1x256xi32>
    %118 = arith.cmpi eq, %17, %117 : vector<1x256xi32>
    %cst_43 = arith.constant 0xFF800000 : f32
    %119 = vector.shape_cast %118 : vector<1x256xi1> to vector<1x256xi1>
    %120 = vector.broadcast %119 : vector<1x256xi1> to vector<32x256xi1>
    %121 = vector.broadcast %cst_43 : f32 to vector<32x256xf32>
    %122 = arith.select %120, %5, %121 : vector<32x256xi1>, vector<32x256xf32>
    %cst_44 = arith.constant dense<0xFF800000> : vector<32xf32>
    %123 = vector.multi_reduction <maximumf>, %122, %cst_44 [1] : vector<32x256xf32> to vector<32xf32>
    %124 = vector.shape_cast %123 : vector<32xf32> to vector<32x1xf32>
    %cst_45 = arith.constant 0x7F800000 : f32
    %125 = vector.shape_cast %118 : vector<1x256xi1> to vector<1x256xi1>
    %126 = vector.broadcast %125 : vector<1x256xi1> to vector<32x256xi1>
    %127 = vector.broadcast %cst_45 : f32 to vector<32x256xf32>
    %128 = arith.select %126, %5, %127 : vector<32x256xi1>, vector<32x256xf32>
    %cst_46 = arith.constant dense<0x7F800000> : vector<32xf32>
    %129 = vector.multi_reduction <minimumf>, %128, %cst_46 [1] : vector<32x256xf32> to vector<32xf32>
    %130 = vector.shape_cast %129 : vector<32xf32> to vector<32x1xf32>
    %c4_i32_47 = arith.constant 4 : i32
    %131 = vector.broadcast %c4_i32_47 : i32 to vector<32x8xi32>
    %132 = arith.cmpi eq, %18, %131 : vector<32x8xi32>
    %133 = vector.shape_cast %124 : vector<32x1xf32> to vector<32x1xf32>
    %134 = vector.broadcast %133 : vector<32x1xf32> to vector<32x8xf32>
    %135 = arith.select %132, %134, %111 : vector<32x8xi1>, vector<32x8xf32>
    %c4_i32_48 = arith.constant 4 : i32
    %136 = vector.broadcast %c4_i32_48 : i32 to vector<32x8xi32>
    %137 = arith.cmpi eq, %18, %136 : vector<32x8xi32>
    %138 = vector.shape_cast %130 : vector<32x1xf32> to vector<32x1xf32>
    %139 = vector.broadcast %138 : vector<32x1xf32> to vector<32x8xf32>
    %140 = arith.select %137, %139, %116 : vector<32x8xi1>, vector<32x8xf32>
    %c5_i32 = arith.constant 5 : i32
    %141 = vector.broadcast %c5_i32 : i32 to vector<1x256xi32>
    %142 = arith.cmpi eq, %17, %141 : vector<1x256xi32>
    %cst_49 = arith.constant 0xFF800000 : f32
    %143 = vector.shape_cast %142 : vector<1x256xi1> to vector<1x256xi1>
    %144 = vector.broadcast %143 : vector<1x256xi1> to vector<32x256xi1>
    %145 = vector.broadcast %cst_49 : f32 to vector<32x256xf32>
    %146 = arith.select %144, %5, %145 : vector<32x256xi1>, vector<32x256xf32>
    %cst_50 = arith.constant dense<0xFF800000> : vector<32xf32>
    %147 = vector.multi_reduction <maximumf>, %146, %cst_50 [1] : vector<32x256xf32> to vector<32xf32>
    %148 = vector.shape_cast %147 : vector<32xf32> to vector<32x1xf32>
    %cst_51 = arith.constant 0x7F800000 : f32
    %149 = vector.shape_cast %142 : vector<1x256xi1> to vector<1x256xi1>
    %150 = vector.broadcast %149 : vector<1x256xi1> to vector<32x256xi1>
    %151 = vector.broadcast %cst_51 : f32 to vector<32x256xf32>
    %152 = arith.select %150, %5, %151 : vector<32x256xi1>, vector<32x256xf32>
    %cst_52 = arith.constant dense<0x7F800000> : vector<32xf32>
    %153 = vector.multi_reduction <minimumf>, %152, %cst_52 [1] : vector<32x256xf32> to vector<32xf32>
    %154 = vector.shape_cast %153 : vector<32xf32> to vector<32x1xf32>
    %c5_i32_53 = arith.constant 5 : i32
    %155 = vector.broadcast %c5_i32_53 : i32 to vector<32x8xi32>
    %156 = arith.cmpi eq, %18, %155 : vector<32x8xi32>
    %157 = vector.shape_cast %148 : vector<32x1xf32> to vector<32x1xf32>
    %158 = vector.broadcast %157 : vector<32x1xf32> to vector<32x8xf32>
    %159 = arith.select %156, %158, %135 : vector<32x8xi1>, vector<32x8xf32>
    %c5_i32_54 = arith.constant 5 : i32
    %160 = vector.broadcast %c5_i32_54 : i32 to vector<32x8xi32>
    %161 = arith.cmpi eq, %18, %160 : vector<32x8xi32>
    %162 = vector.shape_cast %154 : vector<32x1xf32> to vector<32x1xf32>
    %163 = vector.broadcast %162 : vector<32x1xf32> to vector<32x8xf32>
    %164 = arith.select %161, %163, %140 : vector<32x8xi1>, vector<32x8xf32>
    %c6_i32 = arith.constant 6 : i32
    %165 = vector.broadcast %c6_i32 : i32 to vector<1x256xi32>
    %166 = arith.cmpi eq, %17, %165 : vector<1x256xi32>
    %cst_55 = arith.constant 0xFF800000 : f32
    %167 = vector.shape_cast %166 : vector<1x256xi1> to vector<1x256xi1>
    %168 = vector.broadcast %167 : vector<1x256xi1> to vector<32x256xi1>
    %169 = vector.broadcast %cst_55 : f32 to vector<32x256xf32>
    %170 = arith.select %168, %5, %169 : vector<32x256xi1>, vector<32x256xf32>
    %cst_56 = arith.constant dense<0xFF800000> : vector<32xf32>
    %171 = vector.multi_reduction <maximumf>, %170, %cst_56 [1] : vector<32x256xf32> to vector<32xf32>
    %172 = vector.shape_cast %171 : vector<32xf32> to vector<32x1xf32>
    %cst_57 = arith.constant 0x7F800000 : f32
    %173 = vector.shape_cast %166 : vector<1x256xi1> to vector<1x256xi1>
    %174 = vector.broadcast %173 : vector<1x256xi1> to vector<32x256xi1>
    %175 = vector.broadcast %cst_57 : f32 to vector<32x256xf32>
    %176 = arith.select %174, %5, %175 : vector<32x256xi1>, vector<32x256xf32>
    %cst_58 = arith.constant dense<0x7F800000> : vector<32xf32>
    %177 = vector.multi_reduction <minimumf>, %176, %cst_58 [1] : vector<32x256xf32> to vector<32xf32>
    %178 = vector.shape_cast %177 : vector<32xf32> to vector<32x1xf32>
    %c6_i32_59 = arith.constant 6 : i32
    %179 = vector.broadcast %c6_i32_59 : i32 to vector<32x8xi32>
    %180 = arith.cmpi eq, %18, %179 : vector<32x8xi32>
    %181 = vector.shape_cast %172 : vector<32x1xf32> to vector<32x1xf32>
    %182 = vector.broadcast %181 : vector<32x1xf32> to vector<32x8xf32>
    %183 = arith.select %180, %182, %159 : vector<32x8xi1>, vector<32x8xf32>
    %c6_i32_60 = arith.constant 6 : i32
    %184 = vector.broadcast %c6_i32_60 : i32 to vector<32x8xi32>
    %185 = arith.cmpi eq, %18, %184 : vector<32x8xi32>
    %186 = vector.shape_cast %178 : vector<32x1xf32> to vector<32x1xf32>
    %187 = vector.broadcast %186 : vector<32x1xf32> to vector<32x8xf32>
    %188 = arith.select %185, %187, %164 : vector<32x8xi1>, vector<32x8xf32>
    %c7_i32 = arith.constant 7 : i32
    %189 = vector.broadcast %c7_i32 : i32 to vector<1x256xi32>
    %190 = arith.cmpi eq, %17, %189 : vector<1x256xi32>
    %cst_61 = arith.constant 0xFF800000 : f32
    %191 = vector.shape_cast %190 : vector<1x256xi1> to vector<1x256xi1>
    %192 = vector.broadcast %191 : vector<1x256xi1> to vector<32x256xi1>
    %193 = vector.broadcast %cst_61 : f32 to vector<32x256xf32>
    %194 = arith.select %192, %5, %193 : vector<32x256xi1>, vector<32x256xf32>
    %cst_62 = arith.constant dense<0xFF800000> : vector<32xf32>
    %195 = vector.multi_reduction <maximumf>, %194, %cst_62 [1] : vector<32x256xf32> to vector<32xf32>
    %196 = vector.shape_cast %195 : vector<32xf32> to vector<32x1xf32>
    %cst_63 = arith.constant 0x7F800000 : f32
    %197 = vector.shape_cast %190 : vector<1x256xi1> to vector<1x256xi1>
    %198 = vector.broadcast %197 : vector<1x256xi1> to vector<32x256xi1>
    %199 = vector.broadcast %cst_63 : f32 to vector<32x256xf32>
    %200 = arith.select %198, %5, %199 : vector<32x256xi1>, vector<32x256xf32>
    %cst_64 = arith.constant dense<0x7F800000> : vector<32xf32>
    %201 = vector.multi_reduction <minimumf>, %200, %cst_64 [1] : vector<32x256xf32> to vector<32xf32>
    %202 = vector.shape_cast %201 : vector<32xf32> to vector<32x1xf32>
    %c7_i32_65 = arith.constant 7 : i32
    %203 = vector.broadcast %c7_i32_65 : i32 to vector<32x8xi32>
    %204 = arith.cmpi eq, %18, %203 : vector<32x8xi32>
    %205 = vector.shape_cast %196 : vector<32x1xf32> to vector<32x1xf32>
    %206 = vector.broadcast %205 : vector<32x1xf32> to vector<32x8xf32>
    %207 = arith.select %204, %206, %183 : vector<32x8xi1>, vector<32x8xf32>
    %c7_i32_66 = arith.constant 7 : i32
    %208 = vector.broadcast %c7_i32_66 : i32 to vector<32x8xi32>
    %209 = arith.cmpi eq, %18, %208 : vector<32x8xi32>
    %210 = vector.shape_cast %202 : vector<32x1xf32> to vector<32x1xf32>
    %211 = vector.broadcast %210 : vector<32x1xf32> to vector<32x8xf32>
    %212 = arith.select %209, %211, %188 : vector<32x8xi1>, vector<32x8xf32>
    %c0_67 = arith.constant 0 : index
    %c0_68 = arith.constant 0 : index
    %213 = vector.load %arg6[%c0_67, %c0_68] : memref<32x8xf32, #tpu.memory_space<vmem>>, vector<32x8xf32>
    %214 = arith.maximumf %213, %207 : vector<32x8xf32>
    %c0_69 = arith.constant 0 : index
    %c0_70 = arith.constant 0 : index
    %215 = vector.load %arg6[%c0_69, %c0_70] : memref<32x8xf32, #tpu.memory_space<vmem>>, vector<32x8xf32>
    tpu.vector_store %arg6[%c0_69, %c0_70], %214 {strides = array<i32>} : memref<32x8xf32, #tpu.memory_space<vmem>>, vector<32x8xf32>,
    %c0_71 = arith.constant 0 : index
    %c0_72 = arith.constant 0 : index
    %216 = vector.load %arg7[%c0_71, %c0_72] : memref<32x8xf32, #tpu.memory_space<vmem>>, vector<32x8xf32>
    %217 = arith.minimumf %216, %212 : vector<32x8xf32>
    %c0_73 = arith.constant 0 : index
    %c0_74 = arith.constant 0 : index
    %218 = vector.load %arg7[%c0_73, %c0_74] : memref<32x8xf32, #tpu.memory_space<vmem>>, vector<32x8xf32>
    tpu.vector_store %arg7[%c0_73, %c0_74], %217 {strides = array<i32>} : memref<32x8xf32, #tpu.memory_space<vmem>>, vector<32x8xf32>,
    return
  }
  func.func @transform_0(%arg0: i32) -> (i32, i32) {
    %c0_i32 = arith.constant 0 : i32
    %c0_i32_0 = arith.constant 0 : i32
    return %c0_i32, %arg0 : i32, i32
  }
  func.func @transform_1(%arg0: i32) -> (i32, i32) {
    %c0_i32 = arith.constant 0 : i32
    %c0_i32_0 = arith.constant 0 : i32
    %c0_i32_1 = arith.constant 0 : i32
    return %c0_i32, %c0_i32_0 : i32, i32
  }
  func.func @transform_2(%arg0: i32) -> (i32, i32) {
    %c0_i32 = arith.constant 0 : i32
    %c0_i32_0 = arith.constant 0 : i32
    return %c0_i32, %arg0 : i32, i32
  }
  func.func @transform_3(%arg0: i32) -> (i32, i32) {
    %c0_i32 = arith.constant 0 : i32
    %c0_i32_0 = arith.constant 0 : i32
    %c0_i32_1 = arith.constant 0 : i32
    return %c0_i32, %c0_i32_0 : i32, i32
  }
  func.func @transform_4(%arg0: i32) -> (i32, i32) {
    %c0_i32 = arith.constant 0 : i32
    %c0_i32_0 = arith.constant 0 : i32
    %c0_i32_1 = arith.constant 0 : i32
    return %c0_i32, %c0_i32_0 : i32, i32
  }
  func.func @transform_5(%arg0: i32) -> (i32, i32) {
    %c0_i32 = arith.constant 0 : i32
    %c0_i32_0 = arith.constant 0 : i32
    %c0_i32_1 = arith.constant 0 : i32
    return %c0_i32, %c0_i32_0 : i32, i32
  }
  func.func @transform_6(%arg0: i32) -> (i32, i32) {
    %c0_i32 = arith.constant 0 : i32
    %c0_i32_0 = arith.constant 0 : i32
    %c0_i32_1 = arith.constant 0 : i32
    return %c0_i32, %c0_i32_0 : i32, i32
  }
}

</mosaic_0001>

<llo_original>
// kernel: tpu_custom_call.1
$region0: #{tpu_custom_call.1}
  #allocation0 [shape = 'u32[]', space=smem, size = 0x4, offset = 0x4, fixed_abs, tag = 'smem constant byte address 0x4 - core index']
  #allocation1 [shape = 'u32[72,128]{1,0:T(1,128)}', space=vmem, size = 0x9000, scoped, tag = 'internal scratch']
  %s0 = inlined_call_operand.hbm [shape: f32[10,1024], index: 0, kind: input, shape index: {}]
  %s1 = inlined_call_operand.vmem [shape: f32[32,10], index: 1, kind: input, shape index: {}]
  %s2 = inlined_call_operand.vmem [shape: s32[1,1024], index: 2, kind: input, shape index: {}]
  %s3 = inlined_call_operand.vmem [shape: f32[32,1], index: 3, kind: output, shape index: {0}]
  %s4 = inlined_call_operand.vmem [shape: f32[32,1], index: 4, kind: output, shape index: {1}]
  %s5 = inlined_call_operand.vmem [shape: f32[32,8], index: 5, kind: output, shape index: {2}]
  %s6 = inlined_call_operand.vmem [shape: f32[32,8], index: 6, kind: output, shape index: {3}]
  %7 = xla_tuple %s3, %s4, %s5, %s6
  %s8 = sld [smem:[#allocation0]]
  $region77: #{tpu_custom_call.1} parent=0
    _
  %s10 = ssub.s32 1, %s8
  %s11 = scalar_select 0, %s10, %s8
  $region1: #{tpu_custom_call.1} parent=0
    #allocation2 [shape = 'u8[32768]{0}', space=vmem, size = 0x8000, scoped, tag = 'input window, operand 0']
    #allocation3 [shape = 's32[2]{0}', space=sflag, size = 0x8, scoped, tag = 'scoped memory for tpu_custom_call.1']
    %12 = vsyncpa [#allocation3], 0
    %s13 = scalar_lea.sflag [#allocation3], 1
    %14 = vsyncpa %s13, 0
    loop: start=0, step=1, limit=6
    $region2: #{tpu_custom_call.1} parent=1 // loop_pre_header
      _
    $region3: #{tpu_custom_call.1} parent=1 // loop_header
      %s16 = sphi 0, %s20
      %p17 = scmp.ge.s32.totalorder %s16, 6
      %s26 = sphi 0, %s28
      %s29 = sphi 0, %s26
      %s30 = sphi 0, %s29
      %s46 = sphi 0, %s30
      %s50 = sphi 0, %s50
      %s52 = sphi 0, %s50
      %s53 = sphi 0, %s52
      %s67 = sphi 0, %s53
      %s73 = sphi 0, %s75
      %s76 = sphi 0, %s73
      %s77 = sphi 0, %s76
      %s93 = sphi 0, %s77
      %s97 = sphi 0, %s97
      %s99 = sphi 0, %s97
      %s100 = sphi 0, %s99
      %s114 = sphi 0, %s100
      %s118 = sphi 0, %s118
      %s120 = sphi 0, %s118
      %s121 = sphi 0, %s120
      %s135 = sphi 0, %s121
      %s139 = sphi 0, %s139
      %s141 = sphi 0, %s139
      %s142 = sphi 0, %s141
      %s156 = sphi 0, %s142
      %s160 = sphi 0, %s160
      %s162 = sphi 0, %s160
      %s163 = sphi 0, %s162
      %s177 = sphi 0, %s163
    $region4: #{tpu_custom_call.1} parent=1 // loop_header_branch
      %19 = sbr.rel (%p17) target = $region8
    $region5: #{tpu_custom_call.1} parent=1 // loop_body
      %s21 = ssub.s32 %s16, 1
      %s22 = ssub.s32 %s16, 2
      %s23 = sadd.s32 %s16, 1
      %s24 = ssub.s32 %s16, %s23
      %p25 = scmp.eq.s32.totalorder %s24, 0
      %s27 = sadd.s32 %s26, 1
      %s28 = scalar_select %p25, %s26, %s27
      %p31 = pneg %p25
      %p32 = scmp.eq.s32.totalorder %s16, 3
      %p33 = por %p31, %p32
      %p34 = scmp.ne.s32.totalorder %s26, %s29
      %p35 = scmp.eq.s32.totalorder %s16, 0
      %p36 = por %p34, %p35
      %p37 = scmp.ne.s32.totalorder %s26, %s29
      %p38 = scmp.eq.s32.totalorder %s21, 3
      %p39 = por %p37, %p38
      %p40 = scmp.ne.s32.totalorder %s29, %s30
      %p41 = scmp.eq.s32.totalorder %s21, 0
      %p42 = por %p40, %p41
      %p43 = scmp.ne.s32.totalorder %s29, %s30
      %p44 = scmp.eq.s32.totalorder %s22, 3
      %p45 = por %p43, %p44
      %p47 = scmp.ne.s32.totalorder %s30, %s46
      %p48 = scmp.eq.s32.totalorder %s22, 0
      %p49 = por %p47, %p48
      %s51 = sadd.s32 %s50, 1
      %p54 = scmp.eq.s32.totalorder %s16, 3
      %p55 = scmp.ne.s32.totalorder %s50, %s52
      %p56 = scmp.eq.s32.totalorder %s16, 0
      %p57 = por %p55, %p56
      %p58 = scmp.ne.s32.totalorder %s50, %s52
      %p59 = scmp.eq.s32.totalorder %s21, 3
      %p60 = por %p58, %p59
      %p61 = scmp.ne.s32.totalorder %s52, %s53
      %p62 = scmp.eq.s32.totalorder %s21, 0
      %p63 = por %p61, %p62
      %p64 = scmp.ne.s32.totalorder %s52, %s53
      %p65 = scmp.eq.s32.totalorder %s22, 3
      %p66 = por %p64, %p65
      %p68 = scmp.ne.s32.totalorder %s53, %s67
      %p69 = scmp.eq.s32.totalorder %s22, 0
      %p70 = por %p68, %p69
      %s71 = ssub.s32 %s16, %s23
      %p72 = scmp.eq.s32.totalorder %s71, 0
      %s74 = sadd.s32 %s73, 1
      %s75 = scalar_select %p72, %s73, %s74
      %p78 = pneg %p72
      %p79 = scmp.eq.s32.totalorder %s16, 3
      %p80 = por %p78, %p79
      %p81 = scmp.ne.s32.totalorder %s73, %s76
      %p82 = scmp.eq.s32.totalorder %s16, 0
      %p83 = por %p81, %p82
      %p84 = scmp.ne.s32.totalorder %s73, %s76
      %p85 = scmp.eq.s32.totalorder %s21, 3
      %p86 = por %p84, %p85
      %p87 = scmp.ne.s32.totalorder %s76, %s77
      %p88 = scmp.eq.s32.totalorder %s21, 0
      %p89 = por %p87, %p88
      %p90 = scmp.ne.s32.totalorder %s76, %s77
      %p91 = scmp.eq.s32.totalorder %s22, 3
      %p92 = por %p90, %p91
      %p94 = scmp.ne.s32.totalorder %s77, %s93
      %p95 = scmp.eq.s32.totalorder %s22, 0
      %p96 = por %p94, %p95
      %s98 = sadd.s32 %s97, 1
      %p101 = scmp.eq.s32.totalorder %s16, 3
      %p102 = scmp.ne.s32.totalorder %s97, %s99
      %p103 = scmp.eq.s32.totalorder %s16, 0
      %p104 = por %p102, %p103
      %p105 = scmp.ne.s32.totalorder %s97, %s99
      %p106 = scmp.eq.s32.totalorder %s21, 3
      %p107 = por %p105, %p106
      %p108 = scmp.ne.s32.totalorder %s99, %s100
      %p109 = scmp.eq.s32.totalorder %s21, 0
      %p110 = por %p108, %p109
      %p111 = scmp.ne.s32.totalorder %s99, %s100
      %p112 = scmp.eq.s32.totalorder %s22, 3
      %p113 = por %p111, %p112
      %p115 = scmp.ne.s32.totalorder %s100, %s114
      %p116 = scmp.eq.s32.totalorder %s22, 0
      %p117 = por %p115, %p116
      %s119 = sadd.s32 %s118, 1
      %p122 = scmp.eq.s32.totalorder %s16, 3
      %p123 = scmp.ne.s32.totalorder %s118, %s120
      %p124 = scmp.eq.s32.totalorder %s16, 0
      %p125 = por %p123, %p124
      %p126 = scmp.ne.s32.totalorder %s118, %s120
      %p127 = scmp.eq.s32.totalorder %s21, 3
      %p128 = por %p126, %p127
      %p129 = scmp.ne.s32.totalorder %s120, %s121
      %p130 = scmp.eq.s32.totalorder %s21, 0
      %p131 = por %p129, %p130
      %p132 = scmp.ne.s32.totalorder %s120, %s121
      %p133 = scmp.eq.s32.totalorder %s22, 3
      %p134 = por %p132, %p133
      %p136 = scmp.ne.s32.totalorder %s121, %s135
      %p137 = scmp.eq.s32.totalorder %s22, 0
      %p138 = por %p136, %p137
      %s140 = sadd.s32 %s139, 1
      %p143 = scmp.eq.s32.totalorder %s16, 3
      %p144 = scmp.ne.s32.totalorder %s139, %s141
      %p145 = scmp.eq.s32.totalorder %s16, 0
      %p146 = por %p144, %p145
      %p147 = scmp.ne.s32.totalorder %s139, %s141
      %p148 = scmp.eq.s32.totalorder %s21, 3
      %p149 = por %p147, %p148
      %p150 = scmp.ne.s32.totalorder %s141, %s142
      %p151 = scmp.eq.s32.totalorder %s21, 0
      %p152 = por %p150, %p151
      %p153 = scmp.ne.s32.totalorder %s141, %s142
      %p154 = scmp.eq.s32.totalorder %s22, 3
      %p155 = por %p153, %p154
      %p157 = scmp.ne.s32.totalorder %s142, %s156
      %p158 = scmp.eq.s32.totalorder %s22, 0
      %p159 = por %p157, %p158
      %s161 = sadd.s32 %s160, 1
      %p164 = scmp.eq.s32.totalorder %s16, 3
      %p165 = scmp.ne.s32.totalorder %s160, %s162
      %p166 = scmp.eq.s32.totalorder %s16, 0
      %p167 = por %p165, %p166
      %p168 = scmp.ne.s32.totalorder %s160, %s162
      %p169 = scmp.eq.s32.totalorder %s21, 3
      %p170 = por %p168, %p169
      %p171 = scmp.ne.s32.totalorder %s162, %s163
      %p172 = scmp.eq.s32.totalorder %s21, 0
      %p173 = por %p171, %p172
      %p174 = scmp.ne.s32.totalorder %s162, %s163
      %p175 = scmp.eq.s32.totalorder %s22, 3
      %p176 = por %p174, %p175
      %p178 = scmp.ne.s32.totalorder %s163, %s177
      %p179 = scmp.eq.s32.totalorder %s22, 0
      %p180 = por %p178, %p179
      %p181 = scmp.le.s32.totalorder 1, %s16
      %p182 = scmp.lt.s32.totalorder %s16, 5
      %p183 = pnand %p181, %p182
      %p184 = pneg %p183
      // Predicated region
      $region9: #{tpu_custom_call.1} parent=5 // pred_check
        _
      $region10: #{tpu_custom_call.1} parent=5 // pred_check_branch
        %186 = sbr.rel (%p183) target = $region12
      $region11: #{tpu_custom_call.1} parent=5 // pred_region
        %s187 = ssub.s32 %s16, 1
        // Predicated region
        $region13: #{tpu_custom_call.1} parent=11 // pred_check
          %p188 = pneg %p63
        $region14: #{tpu_custom_call.1} parent=11 // pred_check_branch
          %190 = sbr.rel (%p188) target = $region16
        $region15: #{tpu_custom_call.1} parent=11 // pred_region
          _
        $region16: #{tpu_custom_call.1} parent=11 // pred_fallthru
          _
      $region12: #{tpu_custom_call.1} parent=5 // pred_fallthru
        _
      %p191 = scmp.lt.s32.totalorder %s16, 4
      // Predicated region
      $region17: #{tpu_custom_call.1} parent=5 // pred_check
        %p192 = pneg %p191
      $region18: #{tpu_custom_call.1} parent=5 // pred_check_branch
        %194 = sbr.rel (%p192) target = $region20
      $region19: #{tpu_custom_call.1} parent=5 // pred_region
        // Predicated region
        $region21: #{tpu_custom_call.1} parent=19 // pred_check
          %p195 = pneg %p36
        $region22: #{tpu_custom_call.1} parent=19 // pred_check_branch
          %197 = sbr.rel (%p195) target = $region24
        $region23: #{tpu_custom_call.1} parent=19 // pred_region
          %s198 = sand.u32 %s26, 1
          %s199 = scalar_lea.sflag [#allocation3], %s198
          %s200 = sand.u32 %s26, 1
          %s201 = smul.addr %s200, 32
          %s202 = scalar_lea.vmem [#allocation2], %s201
          %s203 = smul.u32 2, %s16
          %205 = vsyncadd %s199, 0
          %s206 = smul.addr %s203, 8
          %s207 = scalar_lea.hbm %s0, %s206
          %s208 = sshll.u32 %s207, 4
          %s209 = int_to_ptr.hbm [resolvable:$true] %s208
          %s210 = sshll.u32 %s202, 4
          %s211 = int_to_ptr.vmem [resolvable:$true] %s210
          %216 = dma.hbm_to_vmem [thread:$0]  %s209, 512, %s211, %s199, 1024, 256, 16
        $region24: #{tpu_custom_call.1} parent=19 // pred_fallthru
          _
        // Predicated region
        $region25: #{tpu_custom_call.1} parent=19 // pred_check
          %p217 = pneg %p83
        $region26: #{tpu_custom_call.1} parent=19 // pred_check_branch
          %219 = sbr.rel (%p217) target = $region28
        $region27: #{tpu_custom_call.1} parent=19 // pred_region
          %s220 = smul.u32 2, %s16
          %p221 = scmp.lt.s32.totalorder %s220, 7
          %s222 = scalar_select %p221, %s220, 7
          %s223 = scalar_lea.vmem %s2, %s222
          %s224 = smul.u32 2, %s16
        $region28: #{tpu_custom_call.1} parent=19 // pred_fallthru
          _
      $region20: #{tpu_custom_call.1} parent=5 // pred_fallthru
        _
      %p225 = scmp.le.s32.totalorder 1, %s16
      %p226 = scmp.lt.s32.totalorder %s16, 5
      %p227 = pnand %p225, %p226
      %p228 = pneg %p227
      // Predicated region
      $region29: #{tpu_custom_call.1} parent=5 // pred_check
        _
      $region30: #{tpu_custom_call.1} parent=5 // pred_check_branch
        %230 = sbr.rel (%p227) target = $region32
      $region31: #{tpu_custom_call.1} parent=5 // pred_region
        %s231 = ssub.s32 %s16, 1
        %s232 = sand.u32 %s29, 1
        %s233 = scalar_lea.sflag [#allocation3], %s232
        %s234 = sand.u32 %s29, 1
        %s235 = smul.addr %s234, 32
        %s236 = scalar_lea.vmem [#allocation2], %s235
        // Predicated region
        $region33: #{tpu_custom_call.1} parent=31 // pred_check
          %p237 = pneg %p42
        $region34: #{tpu_custom_call.1} parent=31 // pred_check_branch
          %239 = sbr.rel (%p237) target = $region36
        $region35: #{tpu_custom_call.1} parent=31 // pred_region
          %241 = dma.done %s233, 512
        $region36: #{tpu_custom_call.1} parent=31 // pred_fallthru
          _
        %s242 = sand.u32 %s29, 1
        %s243 = scalar_lea.sflag [#allocation3], %s242
        %s244 = sand.u32 %s29, 1
        %s245 = smul.addr %s244, 32
        %s246 = scalar_lea.vmem [#allocation2], %s245
        %p247 = pneg %p42
        %p248 = pneg %p39
        %p249 = pneg %p63
        %p250 = pneg %p60
        %s251 = smul.u32 2, %s21
        %p252 = scmp.lt.s32.totalorder %s251, 7
        %s253 = scalar_select %p252, %s251, 7
        %s254 = scalar_lea.vmem %s2, %s253
        %p255 = pneg %p89
        %p256 = pneg %p86
        %p257 = pneg %p110
        %p258 = pneg %p107
        %p259 = pneg %p131
        %p260 = pneg %p128
        %p261 = pneg %p152
        %p262 = pneg %p149
        %p263 = pneg %p173
        %p264 = pneg %p170
        %s265 = smul.u32 2, %s21
        %s266 = smul.u32 2, %s21
        %p267 = scmp.lt.s32.totalorder %s266, 7
        %s268 = scalar_select %p267, %s266, 7
        %s269 = scalar_lea.vmem %s2, %s268
        %s270 = smul.u32 2, %s21
        %p271 = scmp.eq.s32.totalorder %s21, 0
        // Predicated region
        $region37: #{tpu_custom_call.1} parent=31 // pred_check
          %p272 = pneg %p271
        $region38: #{tpu_custom_call.1} parent=31 // pred_check_branch
          %274 = sbr.rel (%p272) target = $region40
        $region39: #{tpu_custom_call.1} parent=31 // pred_region
          %vm275 = vcmask 7168
          %276 = vst.msk [vmem:[%s3] sm:$0xff] %vm275, 0.0
          %277 = vst.msk [vmem:[%s3 + $0x8] sm:$0xff] %vm275, 0.0
          %278 = vst.msk [vmem:[%s3 + $0x10] sm:$0xff] %vm275, 0.0
          %279 = vst.msk [vmem:[%s3 + $0x18] sm:$0xff] %vm275, 0.0
          %280 = vst.msk [vmem:[%s4] sm:$0xff] %vm275, 0.0
          %281 = vst.msk [vmem:[%s4 + $0x8] sm:$0xff] %vm275, 0.0
          %282 = vst.msk [vmem:[%s4 + $0x10] sm:$0xff] %vm275, 0.0
          %283 = vst.msk [vmem:[%s4 + $0x18] sm:$0xff] %vm275, 0.0
          %vm284 = vcmask 64512
          %285 = vst.msk [vmem:[%s5] sm:$0xff] %vm284, -inf
          %286 = vst.msk [vmem:[%s5 + $0x8] sm:$0xff] %vm284, -inf
          %287 = vst.msk [vmem:[%s5 + $0x10] sm:$0xff] %vm284, -inf
          %288 = vst.msk [vmem:[%s5 + $0x18] sm:$0xff] %vm284, -inf
          %289 = vst.msk [vmem:[%s6] sm:$0xff] %vm284, inf
          %290 = vst.msk [vmem:[%s6 + $0x8] sm:$0xff] %vm284, inf
          %291 = vst.msk [vmem:[%s6 + $0x10] sm:$0xff] %vm284, inf
          %292 = vst.msk [vmem:[%s6 + $0x18] sm:$0xff] %vm284, inf
        $region40: #{tpu_custom_call.1} parent=31 // pred_fallthru
          _
        %v293 = vld [vmem:[%s1] sm:$0xff]
        %v294 = vld [vmem:[%s1 + $0x8] sm:$0xff]
        %v295 = vld [vmem:[%s1 + $0x10] sm:$0xff]
        %v296 = vld [vmem:[%s1 + $0x18] sm:$0xff]
        %v297 = vld [vmem:[%s236] sm:$0xff]
        %v298 = vld [vmem:[%s236 + $0x8] sm:$0xff]
        %v299 = vld [vmem:[%s236 + $0x10] sm:$0x3]
        %v300 = vld [vmem:[%s236 + $0x18] sm:$0x3]
        %vm301 = vcmask 80896
        %v303 = vsel %vm301, %v293, 0
        %v306 = vsel %vm301, %v294, 0
        %v309 = vsel %vm301, %v295, 0
        %v312 = vsel %vm301, %v296, 0
        %vm314 = vcmask 1041408
        %v316 = vsel %vm314, %v299, 0
        %v319 = vsel %vm314, %v300, 0
        %321 = vmatpush.msra.mxu0 0.0
        %322 = vmatpush.msra.mxu0 0.0
        %323 = vmatpush.msra.mxu0 0.0
        %324 = vmatpush.msra.mxu0 0.0
        %325 = vmatpush.msra.mxu0 0.0
        %326 = vmatpush.msra.mxu0 0.0
        %327 = vmatpush.msra.mxu0 0.0
        %328 = vmatpush.msra.mxu0 0.0
        %329 = vmatpush.msra.mxu0 0.0
        %330 = vmatpush.msra.mxu0 0.0
        %331 = vmatpush.msra.mxu0 0.0
        %332 = vmatpush.msra.mxu0 0.0
        %333 = vmatpush.msra.mxu0 0.0
        %334 = vmatpush.msra.mxu0 0.0
        %335 = vmatpush.msra.mxu0 %v316
        %336 = vmatpush.msra.mxu0 %v297
        %337 = vmatmul.f32.gmra.mxu0 %v303
        %v338 = vpop.f32.mrf.mxu0
        %v339 = vadd.f32 0.0, %v338
        %340 = vmatmul.f32.gmra.mxu0 %v306
        %v341 = vpop.f32.mrf.mxu0
        %v342 = vadd.f32 0.0, %v341
        %343 = vmatmul.f32.gmra.mxu0 %v309
        %v344 = vpop.f32.mrf.mxu0
        %v345 = vadd.f32 0.0, %v344
        %346 = vmatmul.f32.gmra.mxu0 %v312
        %v347 = vpop.f32.mrf.mxu0
        %v348 = vadd.f32 0.0, %v347
        %349 = vdwg.mxu0
        %350 = vmatpush.msra.mxu0 0.0
        %351 = vmatpush.msra.mxu0 0.0
        %352 = vmatpush.msra.mxu0 0.0
        %353 = vmatpush.msra.mxu0 0.0
        %354 = vmatpush.msra.mxu0 0.0
        %355 = vmatpush.msra.mxu0 0.0
        %356 = vmatpush.msra.mxu0 0.0
        %357 = vmatpush.msra.mxu0 0.0
        %358 = vmatpush.msra.mxu0 0.0
        %359 = vmatpush.msra.mxu0 0.0
        %360 = vmatpush.msra.mxu0 0.0
        %361 = vmatpush.msra.mxu0 0.0
        %362 = vmatpush.msra.mxu0 0.0
        %363 = vmatpush.msra.mxu0 0.0
        %364 = vmatpush.msra.mxu0 %v319
        %365 = vmatpush.msra.mxu0 %v298
        %366 = vmatmul.f32.gmra.mxu0 %v303
        %v367 = vpop.f32.mrf.mxu0
        %v368 = vadd.f32 0.0, %v367
        %369 = vmatmul.f32.gmra.mxu0 %v306
        %v370 = vpop.f32.mrf.mxu0
        %v371 = vadd.f32 0.0, %v370
        %372 = vmatmul.f32.gmra.mxu0 %v309
        %v373 = vpop.f32.mrf.mxu0
        %v374 = vadd.f32 0.0, %v373
        %375 = vmatmul.f32.gmra.mxu0 %v312
        %v376 = vpop.f32.mrf.mxu0
        %v377 = vadd.f32 0.0, %v376
        %378 = vdwg.mxu0
        %v379 = vld [vmem:[%s3] sm:$0xff]
        %v380 = vld [vmem:[%s3 + $0x8] sm:$0xff]
        %v381 = vld [vmem:[%s3 + $0x10] sm:$0xff]
        %v382 = vld [vmem:[%s3 + $0x18] sm:$0xff]
        %v383 = vadd.f32 %v339, %v368
        %384 = vadd.xlane.f32.xlu0 %v383
        %v385 = vpop.xlane.xlu0 %384
        %v386 = vadd.f32 %v342, %v371
        %387 = vadd.xlane.f32.xlu0 %v386
        %v388 = vpop.xlane.xlu0 %387
        %v389 = vadd.f32 %v345, %v374
        %390 = vadd.xlane.f32.xlu0 %v389
        %v391 = vpop.xlane.xlu0 %390
        %v392 = vadd.f32 %v348, %v377
        %393 = vadd.xlane.f32.xlu0 %v392
        %v394 = vpop.xlane.xlu0 %393
        %v395 = vadd.f32 %v379, %v385
        %v396 = vadd.f32 %v380, %v388
        %v397 = vadd.f32 %v381, %v391
        %v398 = vadd.f32 %v382, %v394
        %vm399 = vcmask 7168
        %400 = vst.msk [vmem:[%s3] sm:$0xff] %vm399, %v395
        %401 = vst.msk [vmem:[%s3 + $0x8] sm:$0xff] %vm399, %v396
        %402 = vst.msk [vmem:[%s3 + $0x10] sm:$0xff] %vm399, %v397
        %403 = vst.msk [vmem:[%s3 + $0x18] sm:$0xff] %vm399, %v398
        %v404 = vld [vmem:[%s4] sm:$0xff]
        %v405 = vld [vmem:[%s4 + $0x8] sm:$0xff]
        %v406 = vld [vmem:[%s4 + $0x10] sm:$0xff]
        %v407 = vld [vmem:[%s4 + $0x18] sm:$0xff]
        %v408 = vmul.f32 %v339, %v339
        %v409 = vmul.f32 %v368, %v368
        %v410 = vmul.f32 %v342, %v342
        %v411 = vmul.f32 %v371, %v371
        %v412 = vmul.f32 %v345, %v345
        %v413 = vmul.f32 %v374, %v374
        %v414 = vmul.f32 %v348, %v348
        %v415 = vmul.f32 %v377, %v377
        %v416 = vadd.f32 %v408, %v409
        %417 = vadd.xlane.f32.xlu0 %v416
        %v418 = vpop.xlane.xlu0 %417
        %v419 = vadd.f32 %v410, %v411
        %420 = vadd.xlane.f32.xlu0 %v419
        %v421 = vpop.xlane.xlu0 %420
        %v422 = vadd.f32 %v412, %v413
        %423 = vadd.xlane.f32.xlu0 %v422
        %v424 = vpop.xlane.xlu0 %423
        %v425 = vadd.f32 %v414, %v415
        %426 = vadd.xlane.f32.xlu0 %v425
        %v427 = vpop.xlane.xlu0 %426
        %v428 = vadd.f32 %v404, %v418
        %v429 = vadd.f32 %v405, %v421
        %v430 = vadd.f32 %v406, %v424
        %v431 = vadd.f32 %v407, %v427
        %432 = vst.msk [vmem:[%s4] sm:$0xff] %vm399, %v428
        %433 = vst.msk [vmem:[%s4 + $0x8] sm:$0xff] %vm399, %v429
        %434 = vst.msk [vmem:[%s4 + $0x10] sm:$0xff] %vm399, %v430
        %435 = vst.msk [vmem:[%s4 + $0x18] sm:$0xff] %vm399, %v431
        %v436 = vld [vmem:[%s269] sm:$0x3]
        %v437 = vlaneseq
        %v438 = vand.u32 %v437, 127
        %vm439 = vcmp.eq.s32.totalorder %v436, 0
        %v440 = vsel %vm439, 1, 0
        %v441 = vperm.slane %v440, 0
        %v442 = vperm.slane %v440, 1
        %vm443 = vcmp.eq.s32.totalorder %v441, 1
        %vm444 = vcmp.eq.s32.totalorder %v442, 1
        %v445 = vsel %vm443, %v339, -inf
        %v446 = vsel %vm444, %v368, -inf
        %v447 = vsel %vm443, %v342, -inf
        %v448 = vsel %vm444, %v371, -inf
        %v449 = vsel %vm443, %v345, -inf
        %v450 = vsel %vm444, %v374, -inf
        %v451 = vsel %vm443, %v348, -inf
        %v452 = vsel %vm444, %v377, -inf
        %v453 = vmax.f32 %v445, %v446
        %454 = vmax.xlane.f32.xlu0 %v453
        %v455 = vpop.xlane.xlu0 %454
        %v456 = vmax.f32 %v447, %v448
        %457 = vmax.xlane.f32.xlu0 %v456
        %v458 = vpop.xlane.xlu0 %457
        %v459 = vmax.f32 %v449, %v450
        %460 = vmax.xlane.f32.xlu0 %v459
        %v461 = vpop.xlane.xlu0 %460
        %v462 = vmax.f32 %v451, %v452
        %463 = vmax.xlane.f32.xlu0 %v462
        %v464 = vpop.xlane.xlu0 %463
        %v465 = vsel %vm443, %v339, inf
        %v466 = vsel %vm444, %v368, inf
        %v467 = vsel %vm443, %v342, inf
        %v468 = vsel %vm444, %v371, inf
        %v469 = vsel %vm443, %v345, inf
        %v470 = vsel %vm444, %v374, inf
        %v471 = vsel %vm443, %v348, inf
        %v472 = vsel %vm444, %v377, inf
        %v473 = vmin.f32 %v465, %v466
        %474 = vmin.xlane.f32.xlu0 %v473
        %v475 = vpop.xlane.xlu0 %474
        %v476 = vmin.f32 %v467, %v468
        %477 = vmin.xlane.f32.xlu0 %v476
        %v478 = vpop.xlane.xlu0 %477
        %v479 = vmin.f32 %v469, %v470
        %480 = vmin.xlane.f32.xlu0 %v479
        %v481 = vpop.xlane.xlu0 %480
        %v482 = vmin.f32 %v471, %v472
        %483 = vmin.xlane.f32.xlu0 %v482
        %v484 = vpop.xlane.xlu0 %483
        %vm485 = vcmp.eq.s32.totalorder %v438, 0
        %v486 = vsel %vm485, %v455, -inf
        %v487 = vsel %vm485, %v458, -inf
        %v488 = vsel %vm485, %v461, -inf
        %v489 = vsel %vm485, %v464, -inf
        %v490 = vsel %vm485, %v475, inf
        %v491 = vsel %vm485, %v478, inf
        %v492 = vsel %vm485, %v481, inf
        %v493 = vsel %vm485, %v484, inf
        %vm494 = vcmp.eq.s32.totalorder %v436, 1
        %v495 = vsel %vm494, 1, 0
        %v496 = vperm.slane %v495, 0
        %v497 = vperm.slane %v495, 1
        %vm498 = vcmp.eq.s32.totalorder %v496, 1
        %vm499 = vcmp.eq.s32.totalorder %v497, 1
        %v500 = vsel %vm498, %v339, -inf
        %v501 = vsel %vm499, %v368, -inf
        %v502 = vsel %vm498, %v342, -inf
        %v503 = vsel %vm499, %v371, -inf
        %v504 = vsel %vm498, %v345, -inf
        %v505 = vsel %vm499, %v374, -inf
        %v506 = vsel %vm498, %v348, -inf
        %v507 = vsel %vm499, %v377, -inf
        %v508 = vmax.f32 %v500, %v501
        %509 = vmax.xlane.f32.xlu0 %v508
        %v510 = vpop.xlane.xlu0 %509
        %v511 = vmax.f32 %v502, %v503
        %512 = vmax.xlane.f32.xlu0 %v511
        %v513 = vpop.xlane.xlu0 %512
        %v514 = vmax.f32 %v504, %v505
        %515 = vmax.xlane.f32.xlu0 %v514
        %v516 = vpop.xlane.xlu0 %515
        %v517 = vmax.f32 %v506, %v507
        %518 = vmax.xlane.f32.xlu0 %v517
        %v519 = vpop.xlane.xlu0 %518
        %v520 = vsel %vm498, %v339, inf
        %v521 = vsel %vm499, %v368, inf
        %v522 = vsel %vm498, %v342, inf
        %v523 = vsel %vm499, %v371, inf
        %v524 = vsel %vm498, %v345, inf
        %v525 = vsel %vm499, %v374, inf
        %v526 = vsel %vm498, %v348, inf
        %v527 = vsel %vm499, %v377, inf
        %v528 = vmin.f32 %v520, %v521
        %529 = vmin.xlane.f32.xlu0 %v528
        %v530 = vpop.xlane.xlu0 %529
        %v531 = vmin.f32 %v522, %v523
        %532 = vmin.xlane.f32.xlu0 %v531
        %v533 = vpop.xlane.xlu0 %532
        %v534 = vmin.f32 %v524, %v525
        %535 = vmin.xlane.f32.xlu0 %v534
        %v536 = vpop.xlane.xlu0 %535
        %v537 = vmin.f32 %v526, %v527
        %538 = vmin.xlane.f32.xlu0 %v537
        %v539 = vpop.xlane.xlu0 %538
        %vm540 = vcmp.eq.s32.totalorder %v438, 1
        %v541 = vsel %vm540, %v510, %v486
        %v542 = vsel %vm540, %v513, %v487
        %v543 = vsel %vm540, %v516, %v488
        %v544 = vsel %vm540, %v519, %v489
        %v545 = vsel %vm540, %v530, %v490
        %v546 = vsel %vm540, %v533, %v491
        %v547 = vsel %vm540, %v536, %v492
        %v548 = vsel %vm540, %v539, %v493
        %vm549 = vcmp.eq.s32.totalorder %v436, 2
        %v550 = vsel %vm549, 1, 0
        %v551 = vperm.slane %v550, 0
        %v552 = vperm.slane %v550, 1
        %vm553 = vcmp.eq.s32.totalorder %v551, 1
        %vm554 = vcmp.eq.s32.totalorder %v552, 1
        %v555 = vsel %vm553, %v339, -inf
        %v556 = vsel %vm554, %v368, -inf
        %v557 = vsel %vm553, %v342, -inf
        %v558 = vsel %vm554, %v371, -inf
        %v559 = vsel %vm553, %v345, -inf
        %v560 = vsel %vm554, %v374, -inf
        %v561 = vsel %vm553, %v348, -inf
        %v562 = vsel %vm554, %v377, -inf
        %v563 = vmax.f32 %v555, %v556
        %564 = vmax.xlane.f32.xlu0 %v563
        %v565 = vpop.xlane.xlu0 %564
        %v566 = vmax.f32 %v557, %v558
        %567 = vmax.xlane.f32.xlu0 %v566
        %v568 = vpop.xlane.xlu0 %567
        %v569 = vmax.f32 %v559, %v560
        %570 = vmax.xlane.f32.xlu0 %v569
        %v571 = vpop.xlane.xlu0 %570
        %v572 = vmax.f32 %v561, %v562
        %573 = vmax.xlane.f32.xlu0 %v572
        %v574 = vpop.xlane.xlu0 %573
        %v575 = vsel %vm553, %v339, inf
        %v576 = vsel %vm554, %v368, inf
        %v577 = vsel %vm553, %v342, inf
        %v578 = vsel %vm554, %v371, inf
        %v579 = vsel %vm553, %v345, inf
        %v580 = vsel %vm554, %v374, inf
        %v581 = vsel %vm553, %v348, inf
        %v582 = vsel %vm554, %v377, inf
        %v583 = vmin.f32 %v575, %v576
        %584 = vmin.xlane.f32.xlu0 %v583
        %v585 = vpop.xlane.xlu0 %584
        %v586 = vmin.f32 %v577, %v578
        %587 = vmin.xlane.f32.xlu0 %v586
        %v588 = vpop.xlane.xlu0 %587
        %v589 = vmin.f32 %v579, %v580
        %590 = vmin.xlane.f32.xlu0 %v589
        %v591 = vpop.xlane.xlu0 %590
        %v592 = vmin.f32 %v581, %v582
        %593 = vmin.xlane.f32.xlu0 %v592
        %v594 = vpop.xlane.xlu0 %593
        %vm595 = vcmp.eq.s32.totalorder %v438, 2
        %v596 = vsel %vm595, %v565, %v541
        %v597 = vsel %vm595, %v568, %v542
        %v598 = vsel %vm595, %v571, %v543
        %v599 = vsel %vm595, %v574, %v544
        %v600 = vsel %vm595, %v585, %v545
        %v601 = vsel %vm595, %v588, %v546
        %v602 = vsel %vm595, %v591, %v547
        %v603 = vsel %vm595, %v594, %v548
        %vm604 = vcmp.eq.s32.totalorder %v436, 3
        %v605 = vsel %vm604, 1, 0
        %v606 = vperm.slane %v605, 0
        %v607 = vperm.slane %v605, 1
        %vm608 = vcmp.eq.s32.totalorder %v606, 1
        %vm609 = vcmp.eq.s32.totalorder %v607, 1
        %v610 = vsel %vm608, %v339, -inf
        %v611 = vsel %vm609, %v368, -inf
        %v612 = vsel %vm608, %v342, -inf
        %v613 = vsel %vm609, %v371, -inf
        %v614 = vsel %vm608, %v345, -inf
        %v615 = vsel %vm609, %v374, -inf
        %v616 = vsel %vm608, %v348, -inf
        %v617 = vsel %vm609, %v377, -inf
        %v618 = vmax.f32 %v610, %v611
        %619 = vmax.xlane.f32.xlu0 %v618
        %v620 = vpop.xlane.xlu0 %619
        %v621 = vmax.f32 %v612, %v613
        %622 = vmax.xlane.f32.xlu0 %v621
        %v623 = vpop.xlane.xlu0 %622
        %v624 = vmax.f32 %v614, %v615
        %625 = vmax.xlane.f32.xlu0 %v624
        %v626 = vpop.xlane.xlu0 %625
        %v627 = vmax.f32 %v616, %v617
        %628 = vmax.xlane.f32.xlu0 %v627
        %v629 = vpop.xlane.xlu0 %628
        %v630 = vsel %vm608, %v339, inf
        %v631 = vsel %vm609, %v368, inf
        %v632 = vsel %vm608, %v342, inf
        %v633 = vsel %vm609, %v371, inf
        %v634 = vsel %vm608, %v345, inf
        %v635 = vsel %vm609, %v374, inf
        %v636 = vsel %vm608, %v348, inf
        %v637 = vsel %vm609, %v377, inf
        %v638 = vmin.f32 %v630, %v631
        %639 = vmin.xlane.f32.xlu0 %v638
        %v640 = vpop.xlane.xlu0 %639
        %v641 = vmin.f32 %v632, %v633
        %642 = vmin.xlane.f32.xlu0 %v641
        %v643 = vpop.xlane.xlu0 %642
        %v644 = vmin.f32 %v634, %v635
        %645 = vmin.xlane.f32.xlu0 %v644
        %v646 = vpop.xlane.xlu0 %645
        %v647 = vmin.f32 %v636, %v637
        %648 = vmin.xlane.f32.xlu0 %v647
        %v649 = vpop.xlane.xlu0 %648
        %vm650 = vcmp.eq.s32.totalorder %v438, 3
        %v651 = vsel %vm650, %v620, %v596
        %v652 = vsel %vm650, %v623, %v597
        %v653 = vsel %vm650, %v626, %v598
        %v654 = vsel %vm650, %v629, %v599
        %v655 = vsel %vm650, %v640, %v600
        %v656 = vsel %vm650, %v643, %v601
        %v657 = vsel %vm650, %v646, %v602
        %v658 = vsel %vm650, %v649, %v603
        %vm659 = vcmp.eq.s32.totalorder %v436, 4
        %v660 = vsel %vm659, 1, 0
        %v661 = vperm.slane %v660, 0
        %v662 = vperm.slane %v660, 1
        %vm663 = vcmp.eq.s32.totalorder %v661, 1
        %vm664 = vcmp.eq.s32.totalorder %v662, 1
        %v665 = vsel %vm663, %v339, -inf
        %v666 = vsel %vm664, %v368, -inf
        %v667 = vsel %vm663, %v342, -inf
        %v668 = vsel %vm664, %v371, -inf
        %v669 = vsel %vm663, %v345, -inf
        %v670 = vsel %vm664, %v374, -inf
        %v671 = vsel %vm663, %v348, -inf
        %v672 = vsel %vm664, %v377, -inf
        %v673 = vmax.f32 %v665, %v666
        %674 = vmax.xlane.f32.xlu0 %v673
        %v675 = vpop.xlane.xlu0 %674
        %v676 = vmax.f32 %v667, %v668
        %677 = vmax.xlane.f32.xlu0 %v676
        %v678 = vpop.xlane.xlu0 %677
        %v679 = vmax.f32 %v669, %v670
        %680 = vmax.xlane.f32.xlu0 %v679
        %v681 = vpop.xlane.xlu0 %680
        %v682 = vmax.f32 %v671, %v672
        %683 = vmax.xlane.f32.xlu0 %v682
        %v684 = vpop.xlane.xlu0 %683
        %v685 = vsel %vm663, %v339, inf
        %v686 = vsel %vm664, %v368, inf
        %v687 = vsel %vm663, %v342, inf
        %v688 = vsel %vm664, %v371, inf
        %v689 = vsel %vm663, %v345, inf
        %v690 = vsel %vm664, %v374, inf
        %v691 = vsel %vm663, %v348, inf
        %v692 = vsel %vm664, %v377, inf
        %v693 = vmin.f32 %v685, %v686
        %694 = vmin.xlane.f32.xlu0 %v693
        %v695 = vpop.xlane.xlu0 %694
        %v696 = vmin.f32 %v687, %v688
        %697 = vmin.xlane.f32.xlu0 %v696
        %v698 = vpop.xlane.xlu0 %697
        %v699 = vmin.f32 %v689, %v690
        %700 = vmin.xlane.f32.xlu0 %v699
        %v701 = vpop.xlane.xlu0 %700
        %v702 = vmin.f32 %v691, %v692
        %703 = vmin.xlane.f32.xlu0 %v702
        %v704 = vpop.xlane.xlu0 %703
        %vm705 = vcmp.eq.s32.totalorder %v438, 4
        %v706 = vsel %vm705, %v675, %v651
        %v707 = vsel %vm705, %v678, %v652
        %v708 = vsel %vm705, %v681, %v653
        %v709 = vsel %vm705, %v684, %v654
        %v710 = vsel %vm705, %v695, %v655
        %v711 = vsel %vm705, %v698, %v656
        %v712 = vsel %vm705, %v701, %v657
        %v713 = vsel %vm705, %v704, %v658
        %vm714 = vcmp.eq.s32.totalorder %v436, 5
        %v715 = vsel %vm714, 1, 0
        %v716 = vperm.slane %v715, 0
        %v717 = vperm.slane %v715, 1
        %vm718 = vcmp.eq.s32.totalorder %v716, 1
        %vm719 = vcmp.eq.s32.totalorder %v717, 1
        %v720 = vsel %vm718, %v339, -inf
        %v721 = vsel %vm719, %v368, -inf
        %v722 = vsel %vm718, %v342, -inf
        %v723 = vsel %vm719, %v371, -inf
        %v724 = vsel %vm718, %v345, -inf
        %v725 = vsel %vm719, %v374, -inf
        %v726 = vsel %vm718, %v348, -inf
        %v727 = vsel %vm719, %v377, -inf
        %v728 = vmax.f32 %v720, %v721
        %729 = vmax.xlane.f32.xlu0 %v728
        %v730 = vpop.xlane.xlu0 %729
        %v731 = vmax.f32 %v722, %v723
        %732 = vmax.xlane.f32.xlu0 %v731
        %v733 = vpop.xlane.xlu0 %732
        %v734 = vmax.f32 %v724, %v725
        %735 = vmax.xlane.f32.xlu0 %v734
        %v736 = vpop.xlane.xlu0 %735
        %v737 = vmax.f32 %v726, %v727
        %738 = vmax.xlane.f32.xlu0 %v737
        %v739 = vpop.xlane.xlu0 %738
        %v740 = vsel %vm718, %v339, inf
        %v741 = vsel %vm719, %v368, inf
        %v742 = vsel %vm718, %v342, inf
        %v743 = vsel %vm719, %v371, inf
        %v744 = vsel %vm718, %v345, inf
        %v745 = vsel %vm719, %v374, inf
        %v746 = vsel %vm718, %v348, inf
        %v747 = vsel %vm719, %v377, inf
        %v748 = vmin.f32 %v740, %v741
        %749 = vmin.xlane.f32.xlu0 %v748
        %v750 = vpop.xlane.xlu0 %749
        %v751 = vmin.f32 %v742, %v743
        %752 = vmin.xlane.f32.xlu0 %v751
        %v753 = vpop.xlane.xlu0 %752
        %v754 = vmin.f32 %v744, %v745
        %755 = vmin.xlane.f32.xlu0 %v754
        %v756 = vpop.xlane.xlu0 %755
        %v757 = vmin.f32 %v746, %v747
        %758 = vmin.xlane.f32.xlu0 %v757
        %v759 = vpop.xlane.xlu0 %758
        %vm760 = vcmp.eq.s32.totalorder %v438, 5
        %v761 = vsel %vm760, %v730, %v706
        %v762 = vsel %vm760, %v733, %v707
        %v763 = vsel %vm760, %v736, %v708
        %v764 = vsel %vm760, %v739, %v709
        %v765 = vsel %vm760, %v750, %v710
        %v766 = vsel %vm760, %v753, %v711
        %v767 = vsel %vm760, %v756, %v712
        %v768 = vsel %vm760, %v759, %v713
        %vm769 = vcmp.eq.s32.totalorder %v436, 6
        %v770 = vsel %vm769, 1, 0
        %v771 = vperm.slane %v770, 0
        %v772 = vperm.slane %v770, 1
        %vm773 = vcmp.eq.s32.totalorder %v771, 1
        %vm774 = vcmp.eq.s32.totalorder %v772, 1
        %v775 = vsel %vm773, %v339, -inf
        %v776 = vsel %vm774, %v368, -inf
        %v777 = vsel %vm773, %v342, -inf
        %v778 = vsel %vm774, %v371, -inf
        %v779 = vsel %vm773, %v345, -inf
        %v780 = vsel %vm774, %v374, -inf
        %v781 = vsel %vm773, %v348, -inf
        %v782 = vsel %vm774, %v377, -inf
        %v783 = vmax.f32 %v775, %v776
        %784 = vmax.xlane.f32.xlu0 %v783
        %v785 = vpop.xlane.xlu0 %784
        %v786 = vmax.f32 %v777, %v778
        %787 = vmax.xlane.f32.xlu0 %v786
        %v788 = vpop.xlane.xlu0 %787
        %v789 = vmax.f32 %v779, %v780
        %790 = vmax.xlane.f32.xlu0 %v789
        %v791 = vpop.xlane.xlu0 %790
        %v792 = vmax.f32 %v781, %v782
        %793 = vmax.xlane.f32.xlu0 %v792
        %v794 = vpop.xlane.xlu0 %793
        %v795 = vsel %vm773, %v339, inf
        %v796 = vsel %vm774, %v368, inf
        %v797 = vsel %vm773, %v342, inf
        %v798 = vsel %vm774, %v371, inf
        %v799 = vsel %vm773, %v345, inf
        %v800 = vsel %vm774, %v374, inf
        %v801 = vsel %vm773, %v348, inf
        %v802 = vsel %vm774, %v377, inf
        %v803 = vmin.f32 %v795, %v796
        %804 = vmin.xlane.f32.xlu0 %v803
        %v805 = vpop.xlane.xlu0 %804
        %v806 = vmin.f32 %v797, %v798
        %807 = vmin.xlane.f32.xlu0 %v806
        %v808 = vpop.xlane.xlu0 %807
        %v809 = vmin.f32 %v799, %v800
        %810 = vmin.xlane.f32.xlu0 %v809
        %v811 = vpop.xlane.xlu0 %810
        %v812 = vmin.f32 %v801, %v802
        %813 = vmin.xlane.f32.xlu0 %v812
        %v814 = vpop.xlane.xlu0 %813
        %vm815 = vcmp.eq.s32.totalorder %v438, 6
        %v816 = vsel %vm815, %v785, %v761
        %v817 = vsel %vm815, %v788, %v762
        %v818 = vsel %vm815, %v791, %v763
        %v819 = vsel %vm815, %v794, %v764
        %v820 = vsel %vm815, %v805, %v765
        %v821 = vsel %vm815, %v808, %v766
        %v822 = vsel %vm815, %v811, %v767
        %v823 = vsel %vm815, %v814, %v768
        %vm824 = vcmp.eq.s32.totalorder %v436, 7
        %v825 = vsel %vm824, 1, 0
        %v826 = vperm.slane %v825, 0
        %v827 = vperm.slane %v825, 1
        %vm828 = vcmp.eq.s32.totalorder %v826, 1
        %vm829 = vcmp.eq.s32.totalorder %v827, 1
        %v830 = vsel %vm828, %v339, -inf
        %v831 = vsel %vm829, %v368, -inf
        %v832 = vsel %vm828, %v342, -inf
        %v833 = vsel %vm829, %v371, -inf
        %v834 = vsel %vm828, %v345, -inf
        %v835 = vsel %vm829, %v374, -inf
        %v836 = vsel %vm828, %v348, -inf
        %v837 = vsel %vm829, %v377, -inf
        %v838 = vmax.f32 %v830, %v831
        %839 = vmax.xlane.f32.xlu0 %v838
        %v840 = vpop.xlane.xlu0 %839
        %v841 = vmax.f32 %v832, %v833
        %842 = vmax.xlane.f32.xlu0 %v841
        %v843 = vpop.xlane.xlu0 %842
        %v844 = vmax.f32 %v834, %v835
        %845 = vmax.xlane.f32.xlu0 %v844
        %v846 = vpop.xlane.xlu0 %845
        %v847 = vmax.f32 %v836, %v837
        %848 = vmax.xlane.f32.xlu0 %v847
        %v849 = vpop.xlane.xlu0 %848
        %v850 = vsel %vm828, %v339, inf
        %v851 = vsel %vm829, %v368, inf
        %v852 = vsel %vm828, %v342, inf
        %v853 = vsel %vm829, %v371, inf
        %v854 = vsel %vm828, %v345, inf
        %v855 = vsel %vm829, %v374, inf
        %v856 = vsel %vm828, %v348, inf
        %v857 = vsel %vm829, %v377, inf
        %v858 = vmin.f32 %v850, %v851
        %859 = vmin.xlane.f32.xlu0 %v858
        %v860 = vpop.xlane.xlu0 %859
        %v861 = vmin.f32 %v852, %v853
        %862 = vmin.xlane.f32.xlu0 %v861
        %v863 = vpop.xlane.xlu0 %862
        %v864 = vmin.f32 %v854, %v855
        %865 = vmin.xlane.f32.xlu0 %v864
        %v866 = vpop.xlane.xlu0 %865
        %v867 = vmin.f32 %v856, %v857
        %868 = vmin.xlane.f32.xlu0 %v867
        %v869 = vpop.xlane.xlu0 %868
        %vm870 = vcmp.eq.s32.totalorder %v438, 7
        %v871 = vsel %vm870, %v840, %v816
        %v872 = vsel %vm870, %v843, %v817
        %v873 = vsel %vm870, %v846, %v818
        %v874 = vsel %vm870, %v849, %v819
        %v875 = vsel %vm870, %v860, %v820
        %v876 = vsel %vm870, %v863, %v821
        %v877 = vsel %vm870, %v866, %v822
        %v878 = vsel %vm870, %v869, %v823
        %v879 = vld [vmem:[%s5] sm:$0xff]
        %v880 = vld [vmem:[%s5 + $0x8] sm:$0xff]
        %v881 = vld [vmem:[%s5 + $0x10] sm:$0xff]
        %v882 = vld [vmem:[%s5 + $0x18] sm:$0xff]
        %v883 = vmax.f32 %v879, %v871
        %v884 = vmax.f32 %v880, %v872
        %v885 = vmax.f32 %v881, %v873
        %v886 = vmax.f32 %v882, %v874
        %vm887 = vcmask 64512
        %888 = vst.msk [vmem:[%s5] sm:$0xff] %vm887, %v883
        %889 = vst.msk [vmem:[%s5 + $0x8] sm:$0xff] %vm887, %v884
        %890 = vst.msk [vmem:[%s5 + $0x10] sm:$0xff] %vm887, %v885
        %891 = vst.msk [vmem:[%s5 + $0x18] sm:$0xff] %vm887, %v886
        %v892 = vld [vmem:[%s6] sm:$0xff]
        %v893 = vld [vmem:[%s6 + $0x8] sm:$0xff]
        %v894 = vld [vmem:[%s6 + $0x10] sm:$0xff]
        %v895 = vld [vmem:[%s6 + $0x18] sm:$0xff]
        %v896 = vmin.f32 %v892, %v875
        %v897 = vmin.f32 %v893, %v876
        %v898 = vmin.f32 %v894, %v877
        %v899 = vmin.f32 %v895, %v878
        %900 = vst.msk [vmem:[%s6] sm:$0xff] %vm887, %v896
        %901 = vst.msk [vmem:[%s6 + $0x8] sm:$0xff] %vm887, %v897
        %902 = vst.msk [vmem:[%s6 + $0x10] sm:$0xff] %vm887, %v898
        %903 = vst.msk [vmem:[%s6 + $0x18] sm:$0xff] %vm887, %v899
        // Predicated region
        $region41: #{tpu_custom_call.1} parent=31 // pred_check
          %p904 = pneg %p107
        $region42: #{tpu_custom_call.1} parent=31 // pred_check_branch
          %906 = sbr.rel (%p904) target = $region44
        $region43: #{tpu_custom_call.1} parent=31 // pred_region
          _
        $region44: #{tpu_custom_call.1} parent=31 // pred_fallthru
          _
        // Predicated region
        $region45: #{tpu_custom_call.1} parent=31 // pred_check
          %p907 = pneg %p128
        $region46: #{tpu_custom_call.1} parent=31 // pred_check_branch
          %909 = sbr.rel (%p907) target = $region48
        $region47: #{tpu_custom_call.1} parent=31 // pred_region
          _
        $region48: #{tpu_custom_call.1} parent=31 // pred_fallthru
          _
        // Predicated region
        $region49: #{tpu_custom_call.1} parent=31 // pred_check
          %p910 = pneg %p149
        $region50: #{tpu_custom_call.1} parent=31 // pred_check_branch
          %912 = sbr.rel (%p910) target = $region52
        $region51: #{tpu_custom_call.1} parent=31 // pred_region
          _
        $region52: #{tpu_custom_call.1} parent=31 // pred_fallthru
          _
        // Predicated region
        $region53: #{tpu_custom_call.1} parent=31 // pred_check
          %p913 = pneg %p170
        $region54: #{tpu_custom_call.1} parent=31 // pred_check_branch
          %915 = sbr.rel (%p913) target = $region56
        $region55: #{tpu_custom_call.1} parent=31 // pred_region
          _
        $region56: #{tpu_custom_call.1} parent=31 // pred_fallthru
          _
        // Predicated region
        $region57: #{tpu_custom_call.1} parent=31 // pred_check
          %p916 = pneg %p107
        $region58: #{tpu_custom_call.1} parent=31 // pred_check_branch
          %918 = sbr.rel (%p916) target = $region60
        $region59: #{tpu_custom_call.1} parent=31 // pred_region
          _
        $region60: #{tpu_custom_call.1} parent=31 // pred_fallthru
          _
        // Predicated region
        $region61: #{tpu_custom_call.1} parent=31 // pred_check
          %p919 = pneg %p128
        $region62: #{tpu_custom_call.1} parent=31 // pred_check_branch
          %921 = sbr.rel (%p919) target = $region64
        $region63: #{tpu_custom_call.1} parent=31 // pred_region
          _
        $region64: #{tpu_custom_call.1} parent=31 // pred_fallthru
          _
        // Predicated region
        $region65: #{tpu_custom_call.1} parent=31 // pred_check
          %p922 = pneg %p149
        $region66: #{tpu_custom_call.1} parent=31 // pred_check_branch
          %924 = sbr.rel (%p922) target = $region68
        $region67: #{tpu_custom_call.1} parent=31 // pred_region
          _
        $region68: #{tpu_custom_call.1} parent=31 // pred_fallthru
          _
        // Predicated region
        $region69: #{tpu_custom_call.1} parent=31 // pred_check
          %p925 = pneg %p170
        $region70: #{tpu_custom_call.1} parent=31 // pred_check_branch
          %927 = sbr.rel (%p925) target = $region72
        $region71: #{tpu_custom_call.1} parent=31 // pred_region
          _
        $region72: #{tpu_custom_call.1} parent=31 // pred_fallthru
          _
      $region32: #{tpu_custom_call.1} parent=5 // pred_fallthru
        _
      %p928 = scmp.le.s32.totalorder 2, %s16
      // Predicated region
      $region73: #{tpu_custom_call.1} parent=5 // pred_check
        %p929 = pneg %p928
      $region74: #{tpu_custom_call.1} parent=5 // pred_check_branch
        %931 = sbr.rel (%p929) target = $region76
      $region75: #{tpu_custom_call.1} parent=5 // pred_region
        %s932 = ssub.s32 %s16, 2
      $region76: #{tpu_custom_call.1} parent=5 // pred_fallthru
        _
    $region6: #{tpu_custom_call.1} parent=1 // loop_footer
      %s20 = sadd.s32 1, %s16
    $region7: #{tpu_custom_call.1} parent=1 // loop_footer_branch
      %15 = sbr.rel target = $region3
    $region8: #{tpu_custom_call.1} parent=1 // loop_exit
      _
    %933 = vsyncpa [#allocation3], 1
    %s934 = scalar_lea.sflag [#allocation3], 1
    %935 = vsyncpa %s934, 1

</llo_original>
